<compile_context>
chip_gen: v6e
topology: v6e:2x2x1
jax: 0.10.0
libtpu: 0.0.40
codegen_flags: <defaults>
</compile_context>

<pallas_src>
import jax
import jax.numpy as jnp
from jax.experimental import pallas as pl
from jax.experimental.pallas import tpu as pltpu

IN_DIM = 781
H1 = 256
H2 = 64
H2_PAD = 128          # lane-aligned hidden-2 dim (padded cols stay exactly zero)
OUT_DIM = 1

_SINGLE_STEP_MAX = 256   # batches <= this run as one full-array block


def _round_up(n, m):
    return ((n + m - 1) // m) * m


def mlp_kernel(x_ref, w1_ref, b1_ref, w2_ref, b2_ref, w3_ref, b3_ref, o_ref):
    # x arrives in its native HBM dtype (typically f32, unpadded 781 features);
    # cast to the compute dtype here (hidden under the x DMA; no-op for f32).
    x = x_ref[...].astype(w1_ref.dtype)

    # Layer 1 (dominant FLOPs): (tm, 781) @ (781, 256) on the MXU, f32 accumulate.
    # Mosaic pads the K=781 contraction to MXU granularity internally.
    h1 = jnp.dot(x, w1_ref[...], preferred_element_type=jnp.float32)
    h1 = jnp.maximum(h1 + b1_ref[...], 0.0)

    # Layer 2: (tm, 256) @ (256, 128); padded columns stay exactly zero
    # (zero weights + zero bias through the ReLU).
    h2 = jnp.dot(h1.astype(w2_ref.dtype), w2_ref[...],
                 preferred_element_type=jnp.float32)
    h2 = jnp.maximum(h2 + b2_ref[...], 0.0)

    # Layer 3: contract the padded hidden dim of h2 against the (1, 128) weight
    # row (lhs (1,128) x rhs (tm,128), contracting the last dims) -> lane-dense
    # (1, tm) output row: no N=1 matmul and no masked (tm, 1) stores.
    out_row = jax.lax.dot_general(
        w3_ref[...], h2.astype(w3_ref.dtype),
        dimension_numbers=(((1,), (1,)), ((), ())),
        preferred_element_type=jnp.float32)            # (1, tm)
    # b3 lives in SMEM; scalar read + broadcast add.
    o_ref[...] = (out_row + b3_ref[0, 0]).astype(o_ref.dtype)


def prepare_params(params, compute_dtype=jnp.bfloat16):
    """One-time (cacheable) padding / casting of raw (in, out) weights."""
    w1, b1, w2, b2, w3, b3 = params
    w1p = w1.astype(compute_dtype)                                    # (781, 256)
    b1p = b1.reshape(1, H1).astype(jnp.float32)
    w2p = jnp.pad(w2.astype(compute_dtype), ((0, 0), (0, H2_PAD - H2)))
    b2p = jnp.pad(b2.reshape(1, H2).astype(jnp.float32), ((0, 0), (0, H2_PAD - H2)))
    w3p = jnp.pad(w3.reshape(1, H2).astype(compute_dtype), ((0, 0), (0, H2_PAD - H2)))
    b3p = b3.reshape(1, 1).astype(jnp.float32)
    return (w1p, b1p, w2p, b2p, w3p, b3p)


def chessnet_forward(x, prepared_params, *, tm=1024):
    """x: (B, 781) float32 (streamed raw, no wrapper pad/cast).
    prepared_params: output of prepare_params.  Returns (B, 1) float32."""
    w1, b1, w2, b2, w3, b3 = prepared_params
    B = x.shape[0]
    assert x.shape[1] == IN_DIM
    assert tm % 128 == 0, "tm must be a multiple of 128"

    # Batch tiling:
    #  - tiny batches: one full-array block (always a legal BlockSpec);
    #  - medium batches (256 < B <= tm): split into two 128-aligned steps so
    #    v7x's two TensorCores both get work under dimension_semantics parallel;
    #  - large batches: tile at tm (ragged last block is masked, no padding).
    if B <= _SINGLE_STEP_MAX:
        tm_eff = B
    elif B <= tm:
        tm_eff = _round_up(pl.cdiv(B, 2), 128)
    else:
        tm_eff = tm
    grid = (pl.cdiv(B, tm_eff),)

    const = lambda i: (0, 0)  # weights/biases: one constant block, resident across steps

    out = pl.pallas_call(
        mlp_kernel,
        # Lane-dense output slab: one (1, tm_eff) row per grid step.
        out_shape=jax.ShapeDtypeStruct((1, B), jnp.float32),
        grid_spec=pltpu.PrefetchScalarGridSpec(
            num_scalar_prefetch=0,
            grid=grid,
            in_specs=[
                pl.BlockSpec((tm_eff, IN_DIM), lambda i: (i, 0)),   # x tile (raw dtype)
                pl.BlockSpec((IN_DIM, H1), const),                  # W1
                pl.BlockSpec((1, H1), const),                       # b1
                pl.BlockSpec((H1, H2_PAD), const),                  # W2
                pl.BlockSpec((1, H2_PAD), const),                   # b2
                pl.BlockSpec((1, H2_PAD), const),                   # W3 (row)
                pl.BlockSpec(memory_space=pltpu.MemorySpace.SMEM),  # b3 scalar
            ],
            out_specs=pl.BlockSpec((1, tm_eff), lambda i: (0, i)),
        ),
        # VMEM at tm=1024 (f32 x double-buffer ~6 MiB + weights <1 MiB) is far
        # under the 32 MiB default scoped limit; no vmem_limit_bytes needed.
        compiler_params=pltpu.CompilerParams(
            dimension_semantics=("parallel",),
        ),
    )(x, w1, b1, w2, b2, w3, b3)

    # Layout plumbing only: (1, B) lane-dense slab -> (B, 1).
    return out.reshape(B, OUT_DIM)


def init_params(key):
    """Deterministic init; weights kept (in, out) = transpose of torch Linear.weight."""
    k1, k2, k3, k4, k5, k6 = jax.random.split(key, 6)
    w1 = jax.random.normal(k1, (IN_DIM, H1), jnp.float32) * (1.0 / IN_DIM**0.5)
    b1 = jax.random.normal(k2, (1, H1), jnp.float32) * 0.01
    w2 = jax.random.normal(k3, (H1, H2), jnp.float32) * (1.0 / H1**0.5)
    b2 = jax.random.normal(k4, (1, H2), jnp.float32) * 0.01
    w3 = jax.random.normal(k5, (H2, OUT_DIM), jnp.float32) * (1.0 / H2**0.5)
    b3 = jax.random.normal(k6, (1, OUT_DIM), jnp.float32) * 0.01
    return (w1, b1, w2, b2, w3, b3)


def reference_forward(x, params):
    w1, b1, w2, b2, w3, b3 = params
    h1 = jnp.maximum(x @ w1 + b1, 0.0)
    h2 = jnp.maximum(h1 @ w2 + b2, 0.0)
    return h2 @ w3 + b3


if __name__ == "__main__":
    key = jax.random.PRNGKey(0)
    kx, kp = jax.random.split(key)
    params = init_params(kp)

    params_f32 = prepare_params(params, jnp.float32)    # exact-validation path
    params_bf16 = prepare_params(params, jnp.bfloat16)  # production path

    # Small batch (single-step grid, full-array blocks).
    B = 8
    x = jax.random.normal(kx, (B, IN_DIM), jnp.float32)
    ref = reference_forward(x, params)

    out_f32 = jax.block_until_ready(chessnet_forward(x, params_f32))
    assert out_f32.shape == (B, OUT_DIM)
    assert jnp.allclose(out_f32, ref, atol=1e-4, rtol=1e-4)

    out_bf16 = jax.block_until_ready(chessnet_forward(x, params_bf16))
    assert out_bf16.shape == (B, OUT_DIM)
    # bf16 path quantizes x and weights (f32 accumulation) -> looser tolerance.
    assert jnp.allclose(out_bf16, ref, atol=5e-2, rtol=5e-2)

    # Ragged small batch (B not a multiple of 8; still a single full block).
    x13 = jax.random.normal(jax.random.PRNGKey(1), (13, IN_DIM), jnp.float32)
    out13 = jax.block_until_ready(chessnet_forward(x13, params_f32))
    assert out13.shape == (13, OUT_DIM)
    assert jnp.allclose(out13, reference_forward(x13, params), atol=1e-4, rtol=1e-4)

    # Medium batch: exercises the >=2-step grid (v7x dual-TC sharding) and the
    # masked non-divisible last block, with no wrapper-side padding of x.
    x300 = jax.random.normal(jax.random.PRNGKey(2), (300, IN_DIM), jnp.float32)
    out300 = jax.block_until_ready(chessnet_forward(x300, params_f32))
    assert out300.shape == (300, OUT_DIM)
    assert jnp.allclose(out300, reference_forward(x300, params), atol=1e-4, rtol=1e-4)

    print("KERNEL_OK")
</pallas_src>

<mosaic_0001>
module attributes {stable_mosaic.version = 11 : i64} {
  func.func @mlp_kernel(%arg0: i32, %arg1: memref<8x781xf32, #tpu.memory_space<vmem>>, %arg2: memref<781x256xf32, #tpu.memory_space<vmem>>, %arg3: memref<1x256xf32, #tpu.memory_space<vmem>>, %arg4: memref<256x128xf32, #tpu.memory_space<vmem>>, %arg5: memref<1x128xf32, #tpu.memory_space<vmem>>, %arg6: memref<1x128xf32, #tpu.memory_space<vmem>>, %arg7: memref<1x1xf32, #tpu.memory_space<smem>>, %arg8: memref<1x8xf32, #tpu.memory_space<vmem>>) attributes {dimension_semantics = [#tpu.dimension_semantics<parallel>], iteration_bounds = array<i64: 1>, scalar_prefetch = 0 : i64, scratch_operands = 0 : i64, tpu.core_type = #tpu.core_type<tc>, window_params = [{transform_indices = @transform_0, window_bounds = array<i64: 8, 781>}, {pipeline_mode = #tpu.pipeline_mode<synchronous>, transform_indices = @transform_1, window_bounds = array<i64: 781, 256>}, {pipeline_mode = #tpu.pipeline_mode<synchronous>, transform_indices = @transform_2, window_bounds = array<i64: 1, 256>}, {pipeline_mode = #tpu.pipeline_mode<synchronous>, transform_indices = @transform_3, window_bounds = array<i64: 256, 128>}, {pipeline_mode = #tpu.pipeline_mode<synchronous>, transform_indices = @transform_4, window_bounds = array<i64: 1, 128>}, {pipeline_mode = #tpu.pipeline_mode<synchronous>, transform_indices = @transform_5, window_bounds = array<i64: 1, 128>}, {transform_indices = @transform_6, window_bounds = array<i64: 1, 1>}, {transform_indices = @transform_7, window_bounds = array<i64: 1, 8>}]} {
    %c0 = arith.constant 0 : index
    %c0_0 = arith.constant 0 : index
    %0 = vector.load %arg1[%c0, %c0_0] : memref<8x781xf32, #tpu.memory_space<vmem>>, vector<8x781xf32>
    %c0_1 = arith.constant 0 : index
    %c0_2 = arith.constant 0 : index
    %1 = vector.load %arg2[%c0_1, %c0_2] : memref<781x256xf32, #tpu.memory_space<vmem>>, vector<781x256xf32>
    %cst = arith.constant dense<0.000000e+00> : vector<8x256xf32>
    %2 = tpu.matmul %0, %1, %cst {dimension_numbers = #tpu.dot_dimension_numbers<[1], [0], [0], [1], [0, 0, 1, 1], [], []>} : vector<8x781xf32>, vector<781x256xf32>, vector<8x256xf32> -> vector<8x256xf32>
    %c0_3 = arith.constant 0 : index
    %c0_4 = arith.constant 0 : index
    %3 = vector.load %arg3[%c0_3, %c0_4] : memref<1x256xf32, #tpu.memory_space<vmem>>, vector<1x256xf32>
    %4 = vector.broadcast %3 : vector<1x256xf32> to vector<8x256xf32>
    %5 = arith.addf %2, %4 : vector<8x256xf32>
    %cst_5 = arith.constant 0.000000e+00 : f32
    %6 = vector.broadcast %cst_5 : f32 to vector<8x256xf32>
    %7 = arith.maximumf %5, %6 : vector<8x256xf32>
    %c0_6 = arith.constant 0 : index
    %c0_7 = arith.constant 0 : index
    %8 = vector.load %arg4[%c0_6, %c0_7] : memref<256x128xf32, #tpu.memory_space<vmem>>, vector<256x128xf32>
    %cst_8 = arith.constant dense<0.000000e+00> : vector<8x128xf32>
    %9 = tpu.matmul %7, %8, %cst_8 {dimension_numbers = #tpu.dot_dimension_numbers<[1], [0], [0], [1], [0, 0, 1, 1], [], []>} : vector<8x256xf32>, vector<256x128xf32>, vector<8x128xf32> -> vector<8x128xf32>
    %c0_9 = arith.constant 0 : index
    %c0_10 = arith.constant 0 : index
    %10 = vector.load %arg5[%c0_9, %c0_10] : memref<1x128xf32, #tpu.memory_space<vmem>>, vector<1x128xf32>
    %11 = vector.broadcast %10 : vector<1x128xf32> to vector<8x128xf32>
    %12 = arith.addf %9, %11 : vector<8x128xf32>
    %cst_11 = arith.constant 0.000000e+00 : f32
    %13 = vector.broadcast %cst_11 : f32 to vector<8x128xf32>
    %14 = arith.maximumf %12, %13 : vector<8x128xf32>
    %c0_12 = arith.constant 0 : index
    %c0_13 = arith.constant 0 : index
    %15 = vector.load %arg6[%c0_12, %c0_13] : memref<1x128xf32, #tpu.memory_space<vmem>>, vector<1x128xf32>
    %cst_14 = arith.constant dense<0.000000e+00> : vector<1x8xf32>
    %16 = tpu.matmul %15, %14, %cst_14 {dimension_numbers = #tpu.dot_dimension_numbers<[1], [1], [0], [0], [0, 0, 1, 0], [], []>} : vector<1x128xf32>, vector<8x128xf32>, vector<1x8xf32> -> vector<1x8xf32>
    %c0_15 = arith.constant 0 : index
    %c0_16 = arith.constant 0 : index
    %17 = memref.load %arg7[%c0_15, %c0_16] : memref<1x1xf32, #tpu.memory_space<smem>>
    %18 = vector.broadcast %17 : f32 to vector<1x8xf32>
    %19 = arith.addf %16, %18 : vector<1x8xf32>
    %c0_17 = arith.constant 0 : index
    %c0_18 = arith.constant 0 : index
    %20 = vector.load %arg8[%c0_17, %c0_18] : memref<1x8xf32, #tpu.memory_space<vmem>>, vector<1x8xf32>
    tpu.vector_store %arg8[%c0_17, %c0_18], %19 {strides = array<i32>} : memref<1x8xf32, #tpu.memory_space<vmem>>, vector<1x8xf32>,
    return
  }
  func.func @transform_0(%arg0: i32) -> (i32, i32) {
    %c0_i32 = arith.constant 0 : i32
    %c0_i32_0 = arith.constant 0 : i32
    return %arg0, %c0_i32 : i32, i32
  }
  func.func @transform_1(%arg0: i32) -> (i32, i32) {
    %c0_i32 = arith.constant 0 : i32
    %c0_i32_0 = arith.constant 0 : i32
    %c0_i32_1 = arith.constant 0 : i32
    return %c0_i32, %c0_i32_0 : i32, i32
  }
  func.func @transform_2(%arg0: i32) -> (i32, i32) {
    %c0_i32 = arith.constant 0 : i32
    %c0_i32_0 = arith.constant 0 : i32
    %c0_i32_1 = arith.constant 0 : i32
    return %c0_i32, %c0_i32_0 : i32, i32
  }
  func.func @transform_3(%arg0: i32) -> (i32, i32) {
    %c0_i32 = arith.constant 0 : i32
    %c0_i32_0 = arith.constant 0 : i32
    %c0_i32_1 = arith.constant 0 : i32
    return %c0_i32, %c0_i32_0 : i32, i32
  }
  func.func @transform_4(%arg0: i32) -> (i32, i32) {
    %c0_i32 = arith.constant 0 : i32
    %c0_i32_0 = arith.constant 0 : i32
    %c0_i32_1 = arith.constant 0 : i32
    return %c0_i32, %c0_i32_0 : i32, i32
  }
  func.func @transform_5(%arg0: i32) -> (i32, i32) {
    %c0_i32 = arith.constant 0 : i32
    %c0_i32_0 = arith.constant 0 : i32
    %c0_i32_1 = arith.constant 0 : i32
    return %c0_i32, %c0_i32_0 : i32, i32
  }
  func.func @transform_6(%arg0: i32) -> (i32, i32) {
    %c0_i32 = arith.constant 0 : i32
    %c0_i32_0 = arith.constant 0 : i32
    %c0_i32_1 = arith.constant 0 : i32
    return %c0_i32, %c0_i32_0 : i32, i32
  }
  func.func @transform_7(%arg0: i32) -> (i32, i32) {
    %c0_i32 = arith.constant 0 : i32
    %c0_i32_0 = arith.constant 0 : i32
    return %c0_i32, %arg0 : i32, i32
  }
}

</mosaic_0001>

<llo_original>
// kernel: tpu_custom_call.1
$region0: #{tpu_custom_call.1}
  #allocation0 [shape = 'u32[]', space=smem, size = 0x4, offset = 0x4, fixed_abs, tag = 'smem constant byte address 0x4 - core index']
  #allocation1 [shape = 'u32[144,128]{1,0:T(1,128)}', space=vmem, size = 0x12000, scoped, tag = 'internal scratch']
  #allocation2 [shape = 'f32[1,1]{1,0:T(1,128)S(6)}', space=smem, size = 0x200, scoped, tag = 'scoped memory for tpu_custom_call.1']
  %s0 = inlined_call_operand.hbm [shape: f32[8,781], index: 0, kind: input, shape index: {}]
  %s1 = inlined_call_operand.hbm [shape: f32[781,256], index: 1, kind: input, shape index: {}]
  %s2 = inlined_call_operand.vmem [shape: f32[1,256], index: 2, kind: input, shape index: {}]
  %s3 = inlined_call_operand.hbm [shape: f32[256,128], index: 3, kind: input, shape index: {}]
  %s4 = inlined_call_operand.vmem [shape: f32[1,128], index: 4, kind: input, shape index: {}]
  %s5 = inlined_call_operand.vmem [shape: f32[1,128], index: 5, kind: input, shape index: {}]
  %s6 = inlined_call_operand.<no memory space> [shape: f32[1,1], index: 6, kind: input, shape index: {}]
  %s7 = inlined_call_operand.hbm [shape: f32[1,8], index: 7, kind: output, shape index: {}]
  %s8 = sld [smem:[#allocation0]]
  $region50: #{tpu_custom_call.1} parent=0
    _
  %s10 = ssub.s32 1, %s8
  %s11 = scalar_select 0, %s10, %s8
  %12 = sst [smem:[#allocation2]] %s6
  $region1: #{tpu_custom_call.1} parent=0
    #allocation3 [shape = 'u8[28672]{0}', space=vmem, size = 0x7000, scoped, tag = 'input window, operand 0, single buffered']
    #allocation4 [shape = 's32[1]{0}', space=sflag, size = 0x4, scoped, tag = 'scoped memory for tpu_custom_call.1']
    #allocation5 [shape = 's32[1]{0}', space=sflag, size = 0x4, scoped, tag = 'scoped memory for tpu_custom_call.1']
    #allocation6 [shape = 'u8[802816]{0}', space=vmem, size = 0xc4000, scoped, tag = 'input window, operand 1, single buffered']
    #allocation7 [shape = 's32[1]{0}', space=sflag, size = 0x4, scoped, tag = 'scoped memory for tpu_custom_call.1']
    #allocation8 [shape = 'u8[131072]{0}', space=vmem, size = 0x20000, scoped, tag = 'input window, operand 3, single buffered']
    #allocation9 [shape = 'u8[512]{0}', space=vmem, size = 0x400, scoped, tag = 'output window, operand 0, single buffered']
    %13 = vsyncpa [#allocation4], 0
    %14 = vsyncpa [#allocation7], 0
    %15 = vsyncpa [#allocation5], 0
    // Predicated region
    $region2: #{tpu_custom_call.1} parent=1 // pred_check
      _
    $region3: #{tpu_custom_call.1} parent=1 // pred_check_branch
      %17 = sbr.rel (0) target = $region5
    $region4: #{tpu_custom_call.1} parent=1 // pred_region
      %s19 = ssub.s32 896, 896
      %20 = vsyncadd [#allocation4], %s19
      %s22 = sshll.u32 [#allocation3], 4
      %s23 = int_to_ptr.vmem [resolvable:$true] %s22
      %25 = dma.hbm_to_vmem [thread:$0]  %s0, 896, %s23, [#allocation4]
    $region5: #{tpu_custom_call.1} parent=1 // pred_fallthru
      _
    // Predicated region
    $region6: #{tpu_custom_call.1} parent=1 // pred_check
      _
    $region7: #{tpu_custom_call.1} parent=1 // pred_check_branch
      %27 = sbr.rel (0) target = $region9
    $region8: #{tpu_custom_call.1} parent=1 // pred_region
      %s29 = ssub.s32 25088, 25088
      %30 = vsyncadd [#allocation7], %s29
      %s31 = sshll.u32 [#allocation6], 4
      %s32 = int_to_ptr.vmem [resolvable:$true] %s31
      %37 = dma.hbm_to_vmem [thread:$0]  %s1, 25088, %s32, [#allocation7], 256, 256, 16
    $region9: #{tpu_custom_call.1} parent=1 // pred_fallthru
      _
    // Predicated region
    $region10: #{tpu_custom_call.1} parent=1 // pred_check
      _
    $region11: #{tpu_custom_call.1} parent=1 // pred_check_branch
      %39 = sbr.rel (0) target = $region13
    $region12: #{tpu_custom_call.1} parent=1 // pred_region
      _
    $region13: #{tpu_custom_call.1} parent=1 // pred_fallthru
      _
    // Predicated region
    $region14: #{tpu_custom_call.1} parent=1 // pred_check
      _
    $region15: #{tpu_custom_call.1} parent=1 // pred_check_branch
      %41 = sbr.rel (0) target = $region17
    $region16: #{tpu_custom_call.1} parent=1 // pred_region
      %s43 = ssub.s32 4096, 4096
      %44 = vsyncadd [#allocation7], %s43
      %s45 = sshll.u32 [#allocation8], 4
      %s46 = int_to_ptr.vmem [resolvable:$true] %s45
      %51 = dma.hbm_to_vmem [thread:$0]  %s3, 4096, %s46, [#allocation7], 128, 128, 8
    $region17: #{tpu_custom_call.1} parent=1 // pred_fallthru
      _
    // Predicated region
    $region18: #{tpu_custom_call.1} parent=1 // pred_check
      _
    $region19: #{tpu_custom_call.1} parent=1 // pred_check_branch
      %53 = sbr.rel (0) target = $region21
    $region20: #{tpu_custom_call.1} parent=1 // pred_region
      _
    $region21: #{tpu_custom_call.1} parent=1 // pred_fallthru
      _
    // Predicated region
    $region22: #{tpu_custom_call.1} parent=1 // pred_check
      _
    $region23: #{tpu_custom_call.1} parent=1 // pred_check_branch
      %55 = sbr.rel (0) target = $region25
    $region24: #{tpu_custom_call.1} parent=1 // pred_region
      _
    $region25: #{tpu_custom_call.1} parent=1 // pred_fallthru
      _
    // Predicated region
    $region26: #{tpu_custom_call.1} parent=1 // pred_check
      _
    $region27: #{tpu_custom_call.1} parent=1 // pred_check_branch
      %57 = sbr.rel (0) target = $region29
    $region28: #{tpu_custom_call.1} parent=1 // pred_region
      _
    $region29: #{tpu_custom_call.1} parent=1 // pred_fallthru
      _
    // Predicated region
    $region30: #{tpu_custom_call.1} parent=1 // pred_check
      _
    $region31: #{tpu_custom_call.1} parent=1 // pred_check_branch
      %59 = sbr.rel (0) target = $region33
    $region32: #{tpu_custom_call.1} parent=1 // pred_region
      %60 = dma.done [#allocation4], 896
    $region33: #{tpu_custom_call.1} parent=1 // pred_fallthru
      _
    // Predicated region
    $region34: #{tpu_custom_call.1} parent=1 // pred_check
      _
    $region35: #{tpu_custom_call.1} parent=1 // pred_check_branch
      %62 = sbr.rel (0) target = $region37
    $region36: #{tpu_custom_call.1} parent=1 // pred_region
      %63 = dma.done [#allocation7], 25088
    $region37: #{tpu_custom_call.1} parent=1 // pred_fallthru
      _
    // Predicated region
    $region38: #{tpu_custom_call.1} parent=1 // pred_check
      _
    $region39: #{tpu_custom_call.1} parent=1 // pred_check_branch
      %65 = sbr.rel (0) target = $region41
    $region40: #{tpu_custom_call.1} parent=1 // pred_region
      %66 = dma.done [#allocation7], 4096
    $region41: #{tpu_custom_call.1} parent=1 // pred_fallthru
      _
    %v67 = vld [vmem:[#allocation3] sm:$0xff]
    %v68 = vld [vmem:[#allocation3 + $0x8] sm:$0xff]
    %v69 = vld [vmem:[#allocation3 + $0x10] sm:$0xff]
    %v70 = vld [vmem:[#allocation3 + $0x18] sm:$0xff]
    %v71 = vld [vmem:[#allocation3 + $0x20] sm:$0xff]
    %v72 = vld [vmem:[#allocation3 + $0x28] sm:$0xff]
    %v73 = vld [vmem:[#allocation3 + $0x30] sm:$0xff]
    %v74 = vld [vmem:[#allocation6] sm:$0xff]
    %v75 = vld [vmem:[#allocation6 + $0x8] sm:$0xff]
    %v76 = vld [vmem:[#allocation6 + $0x10] sm:$0xff]
    %v77 = vld [vmem:[#allocation6 + $0x18] sm:$0xff]
    %v78 = vld [vmem:[#allocation6 + $0x20] sm:$0xff]
    %v79 = vld [vmem:[#allocation6 + $0x28] sm:$0xff]
    %v80 = vld [vmem:[#allocation6 + $0x30] sm:$0xff]
    %v81 = vld [vmem:[#allocation6 + $0x38] sm:$0xff]
    %v82 = vld [vmem:[#allocation6 + $0x40] sm:$0xff]
    %v83 = vld [vmem:[#allocation6 + $0x48] sm:$0xff]
    %v84 = vld [vmem:[#allocation6 + $0x50] sm:$0xff]
    %v85 = vld [vmem:[#allocation6 + $0x58] sm:$0xff]
    %v86 = vld [vmem:[#allocation6 + $0x60] sm:$0xff]
    %v87 = vld [vmem:[#allocation6 + $0x68] sm:$0xff]
    %v88 = vld [vmem:[#allocation6 + $0x70] sm:$0xff]
    %v89 = vld [vmem:[#allocation6 + $0x78] sm:$0xff]
    %v90 = vld [vmem:[#allocation6 + $0x80] sm:$0xff]
    %v91 = vld [vmem:[#allocation6 + $0x88] sm:$0xff]
    %v92 = vld [vmem:[#allocation6 + $0x90] sm:$0xff]
    %v93 = vld [vmem:[#allocation6 + $0x98] sm:$0xff]
    %v94 = vld [vmem:[#allocation6 + $0xa0] sm:$0xff]
    %v95 = vld [vmem:[#allocation6 + $0xa8] sm:$0xff]
    %v96 = vld [vmem:[#allocation6 + $0xb0] sm:$0xff]
    %v97 = vld [vmem:[#allocation6 + $0xb8] sm:$0xff]
    %v98 = vld [vmem:[#allocation6 + $0xc0] sm:$0xff]
    %v99 = vld [vmem:[#allocation6 + $0xc8] sm:$0xff]
    %v100 = vld [vmem:[#allocation6 + $0xd0] sm:$0xff]
    %v101 = vld [vmem:[#allocation6 + $0xd8] sm:$0xff]
    %v102 = vld [vmem:[#allocation6 + $0xe0] sm:$0xff]
    %v103 = vld [vmem:[#allocation6 + $0xe8] sm:$0xff]
    %v104 = vld [vmem:[#allocation6 + $0xf0] sm:$0xff]
    %v105 = vld [vmem:[#allocation6 + $0xf8] sm:$0xff]
    %v106 = vld [vmem:[#allocation6 + $0x100] sm:$0xff]
    %v107 = vld [vmem:[#allocation6 + $0x108] sm:$0xff]
    %v108 = vld [vmem:[#allocation6 + $0x110] sm:$0xff]
    %v109 = vld [vmem:[#allocation6 + $0x118] sm:$0xff]
    %v110 = vld [vmem:[#allocation6 + $0x120] sm:$0xff]
    %v111 = vld [vmem:[#allocation6 + $0x128] sm:$0xff]
    %v112 = vld [vmem:[#allocation6 + $0x130] sm:$0xff]
    %v113 = vld [vmem:[#allocation6 + $0x138] sm:$0xff]
    %v114 = vld [vmem:[#allocation6 + $0x140] sm:$0xff]
    %v115 = vld [vmem:[#allocation6 + $0x148] sm:$0xff]
    %v116 = vld [vmem:[#allocation6 + $0x150] sm:$0xff]
    %v117 = vld [vmem:[#allocation6 + $0x158] sm:$0xff]
    %v118 = vld [vmem:[#allocation6 + $0x160] sm:$0xff]
    %v119 = vld [vmem:[#allocation6 + $0x168] sm:$0xff]
    %v120 = vld [vmem:[#allocation6 + $0x170] sm:$0xff]
    %v121 = vld [vmem:[#allocation6 + $0x178] sm:$0xff]
    %v122 = vld [vmem:[#allocation6 + $0x180] sm:$0xff]
    %v123 = vld [vmem:[#allocation6 + $0x188] sm:$0xff]
    %v124 = vld [vmem:[#allocation6 + $0x190] sm:$0xff]
    %v125 = vld [vmem:[#allocation6 + $0x198] sm:$0xff]
    %v126 = vld [vmem:[#allocation6 + $0x1a0] sm:$0xff]
    %v127 = vld [vmem:[#allocation6 + $0x1a8] sm:$0xff]
    %v128 = vld [vmem:[#allocation6 + $0x1b0] sm:$0xff]
    %v129 = vld [vmem:[#allocation6 + $0x1b8] sm:$0xff]
    %v130 = vld [vmem:[#allocation6 + $0x1c0] sm:$0xff]
    %v131 = vld [vmem:[#allocation6 + $0x1c8] sm:$0xff]
    %v132 = vld [vmem:[#allocation6 + $0x1d0] sm:$0xff]
    %v133 = vld [vmem:[#allocation6 + $0x1d8] sm:$0xff]
    %v134 = vld [vmem:[#allocation6 + $0x1e0] sm:$0xff]
    %v135 = vld [vmem:[#allocation6 + $0x1e8] sm:$0xff]
    %v136 = vld [vmem:[#allocation6 + $0x1f0] sm:$0xff]
    %v137 = vld [vmem:[#allocation6 + $0x1f8] sm:$0xff]
    %v138 = vld [vmem:[#allocation6 + $0x200] sm:$0xff]
    %v139 = vld [vmem:[#allocation6 + $0x208] sm:$0xff]
    %v140 = vld [vmem:[#allocation6 + $0x210] sm:$0xff]
    %v141 = vld [vmem:[#allocation6 + $0x218] sm:$0xff]
    %v142 = vld [vmem:[#allocation6 + $0x220] sm:$0xff]
    %v143 = vld [vmem:[#allocation6 + $0x228] sm:$0xff]
    %v144 = vld [vmem:[#allocation6 + $0x230] sm:$0xff]
    %v145 = vld [vmem:[#allocation6 + $0x238] sm:$0xff]
    %v146 = vld [vmem:[#allocation6 + $0x240] sm:$0xff]
    %v147 = vld [vmem:[#allocation6 + $0x248] sm:$0xff]
    %v148 = vld [vmem:[#allocation6 + $0x250] sm:$0xff]
    %v149 = vld [vmem:[#allocation6 + $0x258] sm:$0xff]
    %v150 = vld [vmem:[#allocation6 + $0x260] sm:$0xff]
    %v151 = vld [vmem:[#allocation6 + $0x268] sm:$0xff]
    %v152 = vld [vmem:[#allocation6 + $0x270] sm:$0xff]
    %v153 = vld [vmem:[#allocation6 + $0x278] sm:$0xff]
    %v154 = vld [vmem:[#allocation6 + $0x280] sm:$0xff]
    %v155 = vld [vmem:[#allocation6 + $0x288] sm:$0xff]
    %v156 = vld [vmem:[#allocation6 + $0x290] sm:$0xff]
    %v157 = vld [vmem:[#allocation6 + $0x298] sm:$0xff]
    %v158 = vld [vmem:[#allocation6 + $0x2a0] sm:$0xff]
    %v159 = vld [vmem:[#allocation6 + $0x2a8] sm:$0xff]
    %v160 = vld [vmem:[#allocation6 + $0x2b0] sm:$0xff]
    %v161 = vld [vmem:[#allocation6 + $0x2b8] sm:$0xff]
    %v162 = vld [vmem:[#allocation6 + $0x2c0] sm:$0xff]
    %v163 = vld [vmem:[#allocation6 + $0x2c8] sm:$0xff]
    %v164 = vld [vmem:[#allocation6 + $0x2d0] sm:$0xff]
    %v165 = vld [vmem:[#allocation6 + $0x2d8] sm:$0xff]
    %v166 = vld [vmem:[#allocation6 + $0x2e0] sm:$0xff]
    %v167 = vld [vmem:[#allocation6 + $0x2e8] sm:$0xff]
    %v168 = vld [vmem:[#allocation6 + $0x2f0] sm:$0xff]
    %v169 = vld [vmem:[#allocation6 + $0x2f8] sm:$0xff]
    %v170 = vld [vmem:[#allocation6 + $0x300] sm:$0xff]
    %v171 = vld [vmem:[#allocation6 + $0x308] sm:$0xff]
    %v172 = vld [vmem:[#allocation6 + $0x310] sm:$0xff]
    %v173 = vld [vmem:[#allocation6 + $0x318] sm:$0xff]
    %v174 = vld [vmem:[#allocation6 + $0x320] sm:$0xff]
    %v175 = vld [vmem:[#allocation6 + $0x328] sm:$0xff]
    %v176 = vld [vmem:[#allocation6 + $0x330] sm:$0xff]
    %v177 = vld [vmem:[#allocation6 + $0x338] sm:$0xff]
    %v178 = vld [vmem:[#allocation6 + $0x340] sm:$0xff]
    %v179 = vld [vmem:[#allocation6 + $0x348] sm:$0xff]
    %v180 = vld [vmem:[#allocation6 + $0x350] sm:$0xff]
    %v181 = vld [vmem:[#allocation6 + $0x358] sm:$0xff]
    %v182 = vld [vmem:[#allocation6 + $0x360] sm:$0xff]
    %v183 = vld [vmem:[#allocation6 + $0x368] sm:$0xff]
    %v184 = vld [vmem:[#allocation6 + $0x370] sm:$0xff]
    %v185 = vld [vmem:[#allocation6 + $0x378] sm:$0xff]
    %v186 = vld [vmem:[#allocation6 + $0x380] sm:$0xff]
    %v187 = vld [vmem:[#allocation6 + $0x388] sm:$0xff]
    %v188 = vld [vmem:[#allocation6 + $0x390] sm:$0xff]
    %v189 = vld [vmem:[#allocation6 + $0x398] sm:$0xff]
    %v190 = vld [vmem:[#allocation6 + $0x3a0] sm:$0xff]
    %v191 = vld [vmem:[#allocation6 + $0x3a8] sm:$0xff]
    %v192 = vld [vmem:[#allocation6 + $0x3b0] sm:$0xff]
    %v193 = vld [vmem:[#allocation6 + $0x3b8] sm:$0xff]
    %v194 = vld [vmem:[#allocation6 + $0x3c0] sm:$0xff]
    %v195 = vld [vmem:[#allocation6 + $0x3c8] sm:$0xff]
    %v196 = vld [vmem:[#allocation6 + $0x3d0] sm:$0xff]
    %v197 = vld [vmem:[#allocation6 + $0x3d8] sm:$0xff]
    %v198 = vld [vmem:[#allocation6 + $0x3e0] sm:$0xff]
    %v199 = vld [vmem:[#allocation6 + $0x3e8] sm:$0xff]
    %v200 = vld [vmem:[#allocation6 + $0x3f0] sm:$0xff]
    %v201 = vld [vmem:[#allocation6 + $0x3f8] sm:$0xff]
    %v202 = vld [vmem:[#allocation6 + $0x400] sm:$0xff]
    %v203 = vld [vmem:[#allocation6 + $0x408] sm:$0xff]
    %v204 = vld [vmem:[#allocation6 + $0x410] sm:$0xff]
    %v205 = vld [vmem:[#allocation6 + $0x418] sm:$0xff]
    %v206 = vld [vmem:[#allocation6 + $0x420] sm:$0xff]
    %v207 = vld [vmem:[#allocation6 + $0x428] sm:$0xff]
    %v208 = vld [vmem:[#allocation6 + $0x430] sm:$0xff]
    %v209 = vld [vmem:[#allocation6 + $0x438] sm:$0xff]
    %v210 = vld [vmem:[#allocation6 + $0x440] sm:$0xff]
    %v211 = vld [vmem:[#allocation6 + $0x448] sm:$0xff]
    %v212 = vld [vmem:[#allocation6 + $0x450] sm:$0xff]
    %v213 = vld [vmem:[#allocation6 + $0x458] sm:$0xff]
    %v214 = vld [vmem:[#allocation6 + $0x460] sm:$0xff]
    %v215 = vld [vmem:[#allocation6 + $0x468] sm:$0xff]
    %v216 = vld [vmem:[#allocation6 + $0x470] sm:$0xff]
    %v217 = vld [vmem:[#allocation6 + $0x478] sm:$0xff]
    %v218 = vld [vmem:[#allocation6 + $0x480] sm:$0xff]
    %v219 = vld [vmem:[#allocation6 + $0x488] sm:$0xff]
    %v220 = vld [vmem:[#allocation6 + $0x490] sm:$0xff]
    %v221 = vld [vmem:[#allocation6 + $0x498] sm:$0xff]
    %v222 = vld [vmem:[#allocation6 + $0x4a0] sm:$0xff]
    %v223 = vld [vmem:[#allocation6 + $0x4a8] sm:$0xff]
    %v224 = vld [vmem:[#allocation6 + $0x4b0] sm:$0xff]
    %v225 = vld [vmem:[#allocation6 + $0x4b8] sm:$0xff]
    %v226 = vld [vmem:[#allocation6 + $0x4c0] sm:$0xff]
    %v227 = vld [vmem:[#allocation6 + $0x4c8] sm:$0xff]
    %v228 = vld [vmem:[#allocation6 + $0x4d0] sm:$0xff]
    %v229 = vld [vmem:[#allocation6 + $0x4d8] sm:$0xff]
    %v230 = vld [vmem:[#allocation6 + $0x4e0] sm:$0xff]
    %v231 = vld [vmem:[#allocation6 + $0x4e8] sm:$0xff]
    %v232 = vld [vmem:[#allocation6 + $0x4f0] sm:$0xff]
    %v233 = vld [vmem:[#allocation6 + $0x4f8] sm:$0xff]
    %v234 = vld [vmem:[#allocation6 + $0x500] sm:$0xff]
    %v235 = vld [vmem:[#allocation6 + $0x508] sm:$0xff]
    %v236 = vld [vmem:[#allocation6 + $0x510] sm:$0xff]
    %v237 = vld [vmem:[#allocation6 + $0x518] sm:$0xff]
    %v238 = vld [vmem:[#allocation6 + $0x520] sm:$0xff]
    %v239 = vld [vmem:[#allocation6 + $0x528] sm:$0xff]
    %v240 = vld [vmem:[#allocation6 + $0x530] sm:$0xff]
    %v241 = vld [vmem:[#allocation6 + $0x538] sm:$0xff]
    %v242 = vld [vmem:[#allocation6 + $0x540] sm:$0xff]
    %v243 = vld [vmem:[#allocation6 + $0x548] sm:$0xff]
    %v244 = vld [vmem:[#allocation6 + $0x550] sm:$0xff]
    %v245 = vld [vmem:[#allocation6 + $0x558] sm:$0xff]
    %v246 = vld [vmem:[#allocation6 + $0x560] sm:$0xff]
    %v247 = vld [vmem:[#allocation6 + $0x568] sm:$0xff]
    %v248 = vld [vmem:[#allocation6 + $0x570] sm:$0xff]
    %v249 = vld [vmem:[#allocation6 + $0x578] sm:$0xff]
    %v250 = vld [vmem:[#allocation6 + $0x580] sm:$0xff]
    %v251 = vld [vmem:[#allocation6 + $0x588] sm:$0xff]
    %v252 = vld [vmem:[#allocation6 + $0x590] sm:$0xff]
    %v253 = vld [vmem:[#allocation6 + $0x598] sm:$0xff]
    %v254 = vld [vmem:[#allocation6 + $0x5a0] sm:$0xff]
    %v255 = vld [vmem:[#allocation6 + $0x5a8] sm:$0xff]
    %v256 = vld [vmem:[#allocation6 + $0x5b0] sm:$0xff]
    %v257 = vld [vmem:[#allocation6 + $0x5b8] sm:$0xff]
    %v258 = vld [vmem:[#allocation6 + $0x5c0] sm:$0xff]
    %v259 = vld [vmem:[#allocation6 + $0x5c8] sm:$0xff]
    %v260 = vld [vmem:[#allocation6 + $0x5d0] sm:$0xff]
    %v261 = vld [vmem:[#allocation6 + $0x5d8] sm:$0xff]
    %v262 = vld [vmem:[#allocation6 + $0x5e0] sm:$0xff]
    %v263 = vld [vmem:[#allocation6 + $0x5e8] sm:$0xff]
    %v264 = vld [vmem:[#allocation6 + $0x5f0] sm:$0xff]
    %v265 = vld [vmem:[#allocation6 + $0x5f8] sm:$0xff]
    %v266 = vld [vmem:[#allocation6 + $0x600] sm:$0xff]
    %v267 = vld [vmem:[#allocation6 + $0x608] sm:$0xff]
    %v268 = vld [vmem:[#allocation6 + $0x610] sm:$0x1f]
    %v269 = vld [vmem:[#allocation6 + $0x618] sm:$0x1f]
    %v270 = vld [vmem:[%s2] sm:$0x3]
    %v272 = vlaneseq
    %v273 = vshrl.u32 %v272, 7
    %v274 = vsub.s32 0, %v273
    %v275 = vrot.slane %v270, %v274
    %v276 = vlaneseq
    %v277 = vshrl.u32 %v276, 7
    %v278 = vsub.s32 1, %v277
    %v279 = vrot.slane %v270, %v278
    %vm282 = vcmask 105472
    %v284 = vsel %vm282, %v73, 0
    %vm286 = vcmask 1044480
    %v288 = vsel %vm286, %v268, 0
    %v291 = vsel %vm286, %v269, 0
    %293 = vmatprep.subr.mxu0 %v105
    %294 = vmatpush1.msra.mxu0 %v104
    %295 = vmatprep.subr.mxu0 %v103
    %296 = vmatpush1.msra.mxu0 %v102
    %297 = vmatprep.subr.mxu0 %v101
    %298 = vmatpush1.msra.mxu0 %v100
    %299 = vmatprep.subr.mxu0 %v99
    %300 = vmatpush1.msra.mxu0 %v98
    %301 = vmatprep.subr.mxu0 %v97
    %302 = vmatpush1.msra.mxu0 %v96
    %303 = vmatprep.subr.mxu0 %v95
    %304 = vmatpush1.msra.mxu0 %v94
    %305 = vmatprep.subr.mxu0 %v93
    %306 = vmatpush1.msra.mxu0 %v92
    %307 = vmatprep.subr.mxu0 %v91
    %308 = vmatpush1.msra.mxu0 %v90
    %309 = vmatprep.subr.mxu0 %v89
    %310 = vmatpush1.msra.mxu0 %v88
    %311 = vmatprep.subr.mxu0 %v87
    %312 = vmatpush1.msra.mxu0 %v86
    %313 = vmatprep.subr.mxu0 %v85
    %314 = vmatpush1.msra.mxu0 %v84
    %315 = vmatprep.subr.mxu0 %v83
    %316 = vmatpush1.msra.mxu0 %v82
    %317 = vmatprep.subr.mxu0 %v81
    %318 = vmatpush1.msra.mxu0 %v80
    %319 = vmatprep.subr.mxu0 %v79
    %320 = vmatpush1.msra.mxu0 %v78
    %321 = vmatprep.subr.mxu0 %v77
    %322 = vmatpush1.msra.mxu0 %v76
    %323 = vmatprep.subr.mxu0 %v75
    %324 = vmatpush1.msra.mxu0 %v74
    %325 = vmatprep.subr.mxu0 %v137
    %326 = vmatpush2.msra.mxu0 %v136
    %327 = vmatprep.subr.mxu0 %v135
    %328 = vmatpush2.msra.mxu0 %v134
    %329 = vmatprep.subr.mxu0 %v133
    %330 = vmatpush2.msra.mxu0 %v132
    %331 = vmatprep.subr.mxu0 %v131
    %332 = vmatpush2.msra.mxu0 %v130
    %333 = vmatprep.subr.mxu0 %v129
    %334 = vmatpush2.msra.mxu0 %v128
    %335 = vmatprep.subr.mxu0 %v127
    %336 = vmatpush2.msra.mxu0 %v126
    %337 = vmatprep.subr.mxu0 %v125
    %338 = vmatpush2.msra.mxu0 %v124
    %339 = vmatprep.subr.mxu0 %v123
    %340 = vmatpush2.msra.mxu0 %v122
    %341 = vmatprep.subr.mxu0 %v121
    %342 = vmatpush2.msra.mxu0 %v120
    %343 = vmatprep.subr.mxu0 %v119
    %344 = vmatpush2.msra.mxu0 %v118
    %345 = vmatprep.subr.mxu0 %v117
    %346 = vmatpush2.msra.mxu0 %v116
    %347 = vmatprep.subr.mxu0 %v115
    %348 = vmatpush2.msra.mxu0 %v114
    %349 = vmatprep.subr.mxu0 %v113
    %350 = vmatpush2.msra.mxu0 %v112
    %351 = vmatprep.subr.mxu0 %v111
    %352 = vmatpush2.msra.mxu0 %v110
    %353 = vmatprep.subr.mxu0 %v109
    %354 = vmatpush2.msra.mxu0 %v108
    %355 = vmatprep.subr.mxu0 %v107
    %356 = vmatpush2.msra.mxu0 %v106
    %357 = vmatprep.mubr.f32.mxu0 %v68
    %358 = vmatmul.mubr.f32.gmra.mxu0 %v67
    %v359 = vpop.f32.mrf.mxu0
    %v360 = vadd.f32 %v275, %v359
    %v361 = vpop.f32.mrf.mxu0
    %v362 = vadd.f32 %v279, %v361
    %363 = vdwg.mxu0
    %364 = vmatprep.subr.mxu0 %v169
    %365 = vmatpush1.msra.mxu0 %v168
    %366 = vmatprep.subr.mxu0 %v167
    %367 = vmatpush1.msra.mxu0 %v166
    %368 = vmatprep.subr.mxu0 %v165
    %369 = vmatpush1.msra.mxu0 %v164
    %370 = vmatprep.subr.mxu0 %v163
    %371 = vmatpush1.msra.mxu0 %v162
    %372 = vmatprep.subr.mxu0 %v161
    %373 = vmatpush1.msra.mxu0 %v160
    %374 = vmatprep.subr.mxu0 %v159
    %375 = vmatpush1.msra.mxu0 %v158
    %376 = vmatprep.subr.mxu0 %v157
    %377 = vmatpush1.msra.mxu0 %v156
    %378 = vmatprep.subr.mxu0 %v155
    %379 = vmatpush1.msra.mxu0 %v154
    %380 = vmatprep.subr.mxu0 %v153
    %381 = vmatpush1.msra.mxu0 %v152
    %382 = vmatprep.subr.mxu0 %v151
    %383 = vmatpush1.msra.mxu0 %v150
    %384 = vmatprep.subr.mxu0 %v149
    %385 = vmatpush1.msra.mxu0 %v148
    %386 = vmatprep.subr.mxu0 %v147
    %387 = vmatpush1.msra.mxu0 %v146
    %388 = vmatprep.subr.mxu0 %v145
    %389 = vmatpush1.msra.mxu0 %v144
    %390 = vmatprep.subr.mxu0 %v143
    %391 = vmatpush1.msra.mxu0 %v142
    %392 = vmatprep.subr.mxu0 %v141
    %393 = vmatpush1.msra.mxu0 %v140
    %394 = vmatprep.subr.mxu0 %v139
    %395 = vmatpush1.msra.mxu0 %v138
    %396 = vmatprep.subr.mxu0 %v201
    %397 = vmatpush2.msra.mxu0 %v200
    %398 = vmatprep.subr.mxu0 %v199
    %399 = vmatpush2.msra.mxu0 %v198
    %400 = vmatprep.subr.mxu0 %v197
    %401 = vmatpush2.msra.mxu0 %v196
    %402 = vmatprep.subr.mxu0 %v195
    %403 = vmatpush2.msra.mxu0 %v194
    %404 = vmatprep.subr.mxu0 %v193
    %405 = vmatpush2.msra.mxu0 %v192
    %406 = vmatprep.subr.mxu0 %v191
    %407 = vmatpush2.msra.mxu0 %v190
    %408 = vmatprep.subr.mxu0 %v189
    %409 = vmatpush2.msra.mxu0 %v188
    %410 = vmatprep.subr.mxu0 %v187
    %411 = vmatpush2.msra.mxu0 %v186
    %412 = vmatprep.subr.mxu0 %v185
    %413 = vmatpush2.msra.mxu0 %v184
    %414 = vmatprep.subr.mxu0 %v183
    %415 = vmatpush2.msra.mxu0 %v182
    %416 = vmatprep.subr.mxu0 %v181
    %417 = vmatpush2.msra.mxu0 %v180
    %418 = vmatprep.subr.mxu0 %v179
    %419 = vmatpush2.msra.mxu0 %v178
    %420 = vmatprep.subr.mxu0 %v177
    %421 = vmatpush2.msra.mxu0 %v176
    %422 = vmatprep.subr.mxu0 %v175
    %423 = vmatpush2.msra.mxu0 %v174
    %424 = vmatprep.subr.mxu0 %v173
    %425 = vmatpush2.msra.mxu0 %v172
    %426 = vmatprep.subr.mxu0 %v171
    %427 = vmatpush2.msra.mxu0 %v170
    %428 = vmatprep.mubr.f32.mxu0 %v70
    %429 = vmatmul.mubr.f32.gmra.mxu0 %v69
    %v430 = vpop.f32.mrf.mxu0
    %v431 = vadd.f32 %v360, %v430
    %v432 = vpop.f32.mrf.mxu0
    %v433 = vadd.f32 %v362, %v432
    %434 = vdwg.mxu0
    %435 = vmatprep.subr.mxu0 %v233
    %436 = vmatpush1.msra.mxu0 %v232
    %437 = vmatprep.subr.mxu0 %v231
    %438 = vmatpush1.msra.mxu0 %v230
    %439 = vmatprep.subr.mxu0 %v229
    %440 = vmatpush1.msra.mxu0 %v228
    %441 = vmatprep.subr.mxu0 %v227
    %442 = vmatpush1.msra.mxu0 %v226
    %443 = vmatprep.subr.mxu0 %v225
    %444 = vmatpush1.msra.mxu0 %v224
    %445 = vmatprep.subr.mxu0 %v223
    %446 = vmatpush1.msra.mxu0 %v222
    %447 = vmatprep.subr.mxu0 %v221
    %448 = vmatpush1.msra.mxu0 %v220
    %449 = vmatprep.subr.mxu0 %v219
    %450 = vmatpush1.msra.mxu0 %v218
    %451 = vmatprep.subr.mxu0 %v217
    %452 = vmatpush1.msra.mxu0 %v216
    %453 = vmatprep.subr.mxu0 %v215
    %454 = vmatpush1.msra.mxu0 %v214
    %455 = vmatprep.subr.mxu0 %v213
    %456 = vmatpush1.msra.mxu0 %v212
    %457 = vmatprep.subr.mxu0 %v211
    %458 = vmatpush1.msra.mxu0 %v210
    %459 = vmatprep.subr.mxu0 %v209
    %460 = vmatpush1.msra.mxu0 %v208
    %461 = vmatprep.subr.mxu0 %v207
    %462 = vmatpush1.msra.mxu0 %v206
    %463 = vmatprep.subr.mxu0 %v205
    %464 = vmatpush1.msra.mxu0 %v204
    %465 = vmatprep.subr.mxu0 %v203
    %466 = vmatpush1.msra.mxu0 %v202
    %467 = vmatprep.subr.mxu0 %v265
    %468 = vmatpush2.msra.mxu0 %v264
    %469 = vmatprep.subr.mxu0 %v263
    %470 = vmatpush2.msra.mxu0 %v262
    %471 = vmatprep.subr.mxu0 %v261
    %472 = vmatpush2.msra.mxu0 %v260
    %473 = vmatprep.subr.mxu0 %v259
    %474 = vmatpush2.msra.mxu0 %v258
    %475 = vmatprep.subr.mxu0 %v257
    %476 = vmatpush2.msra.mxu0 %v256
    %477 = vmatprep.subr.mxu0 %v255
    %478 = vmatpush2.msra.mxu0 %v254
    %479 = vmatprep.subr.mxu0 %v253
    %480 = vmatpush2.msra.mxu0 %v252
    %481 = vmatprep.subr.mxu0 %v251
    %482 = vmatpush2.msra.mxu0 %v250
    %483 = vmatprep.subr.mxu0 %v249
    %484 = vmatpush2.msra.mxu0 %v248
    %485 = vmatprep.subr.mxu0 %v247
    %486 = vmatpush2.msra.mxu0 %v246
    %487 = vmatprep.subr.mxu0 %v245
    %488 = vmatpush2.msra.mxu0 %v244
    %489 = vmatprep.subr.mxu0 %v243
    %490 = vmatpush2.msra.mxu0 %v242
    %491 = vmatprep.subr.mxu0 %v241
    %492 = vmatpush2.msra.mxu0 %v240
    %493 = vmatprep.subr.mxu0 %v239
    %494 = vmatpush2.msra.mxu0 %v238
    %495 = vmatprep.subr.mxu0 %v237
    %496 = vmatpush2.msra.mxu0 %v236
    %497 = vmatprep.subr.mxu0 %v235
    %498 = vmatpush2.msra.mxu0 %v234
    %499 = vmatprep.mubr.f32.mxu0 %v72
    %500 = vmatmul.mubr.f32.gmra.mxu0 %v71
    %v501 = vpop.f32.mrf.mxu0
    %v502 = vadd.f32 %v431, %v501
    %v503 = vpop.f32.mrf.mxu0
    %v504 = vadd.f32 %v433, %v503
    %505 = vdwg.mxu0
    %506 = vmatprep.subr.mxu0 0.0
    %507 = vmatpush1.msra.mxu0 0.0
    %508 = vmatprep.subr.mxu0 0.0
    %509 = vmatpush1.msra.mxu0 0.0
    %510 = vmatprep.subr.mxu0 0.0
    %511 = vmatpush1.msra.mxu0 0.0
    %512 = vmatprep.subr.mxu0 0.0
    %513 = vmatpush1.msra.mxu0 0.0
    %514 = vmatprep.subr.mxu0 0.0
    %515 = vmatpush1.msra.mxu0 0.0
    %516 = vmatprep.subr.mxu0 0.0
    %517 = vmatpush1.msra.mxu0 0.0
    %518 = vmatprep.subr.mxu0 0.0
    %519 = vmatpush1.msra.mxu0 0.0
    %520 = vmatprep.subr.mxu0 0.0
    %521 = vmatpush1.msra.mxu0 0.0
    %522 = vmatprep.subr.mxu0 0.0
    %523 = vmatpush1.msra.mxu0 0.0
    %524 = vmatprep.subr.mxu0 0.0
    %525 = vmatpush1.msra.mxu0 0.0
    %526 = vmatprep.subr.mxu0 0.0
    %527 = vmatpush1.msra.mxu0 0.0
    %528 = vmatprep.subr.mxu0 0.0
    %529 = vmatpush1.msra.mxu0 0.0
    %530 = vmatprep.subr.mxu0 0.0
    %531 = vmatpush1.msra.mxu0 0.0
    %532 = vmatprep.subr.mxu0 0.0
    %533 = vmatpush1.msra.mxu0 0.0
    %534 = vmatprep.subr.mxu0 %v291
    %535 = vmatpush1.msra.mxu0 %v288
    %536 = vmatprep.subr.mxu0 %v267
    %537 = vmatpush1.msra.mxu0 %v266
    %538 = vmatprep.subr.mxu0 0.0
    %539 = vmatpush2.msra.mxu0 0.0
    %540 = vmatprep.subr.mxu0 0.0
    %541 = vmatpush2.msra.mxu0 0.0
    %542 = vmatprep.subr.mxu0 0.0
    %543 = vmatpush2.msra.mxu0 0.0
    %544 = vmatprep.subr.mxu0 0.0
    %545 = vmatpush2.msra.mxu0 0.0
    %546 = vmatprep.subr.mxu0 0.0
    %547 = vmatpush2.msra.mxu0 0.0
    %548 = vmatprep.subr.mxu0 0.0
    %549 = vmatpush2.msra.mxu0 0.0
    %550 = vmatprep.subr.mxu0 0.0
    %551 = vmatpush2.msra.mxu0 0.0
    %552 = vmatprep.subr.mxu0 0.0
    %553 = vmatpush2.msra.mxu0 0.0
    %554 = vmatprep.subr.mxu0 0.0
    %555 = vmatpush2.msra.mxu0 0.0
    %556 = vmatprep.subr.mxu0 0.0
    %557 = vmatpush2.msra.mxu0 0.0
    %558 = vmatprep.subr.mxu0 0.0
    %559 = vmatpush2.msra.mxu0 0.0
    %560 = vmatprep.subr.mxu0 0.0
    %561 = vmatpush2.msra.mxu0 0.0
    %562 = vmatprep.subr.mxu0 0.0
    %563 = vmatpush2.msra.mxu0 0.0
    %564 = vmatprep.subr.mxu0 0.0
    %565 = vmatpush2.msra.mxu0 0.0
    %566 = vmatprep.subr.mxu0 0.0
    %567 = vmatpush2.msra.mxu0 0.0
    %568 = vmatprep.subr.mxu0 0.0
    %569 = vmatpush2.msra.mxu0 0.0
    %570 = vmatprep.mubr.f32.mxu0 0.0
    %571 = vmatmul.mubr.f32.gmra.mxu0 %v284
    %v572 = vpop.f32.mrf.mxu0
    %v573 = vadd.f32 %v502, %v572
    %v574 = vpop.f32.mrf.mxu0
    %v575 = vadd.f32 %v504, %v574
    %576 = vdwg.mxu0
    %v577 = vmax.f32 %v573, 0.0
    %v578 = vmax.f32 %v575, 0.0
    %v579 = vld [vmem:[#allocation8] sm:$0xff]
    %v580 = vld [vmem:[#allocation8 + $0x8] sm:$0xff]
    %v581 = vld [vmem:[#allocation8 + $0x10] sm:$0xff]
    %v582 = vld [vmem:[#allocation8 + $0x18] sm:$0xff]
    %v583 = vld [vmem:[#allocation8 + $0x20] sm:$0xff]
    %v584 = vld [vmem:[#allocation8 + $0x28] sm:$0xff]
    %v585 = vld [vmem:[#allocation8 + $0x30] sm:$0xff]
    %v586 = vld [vmem:[#allocation8 + $0x38] sm:$0xff]
    %v587 = vld [vmem:[#allocation8 + $0x40] sm:$0xff]
    %v588 = vld [vmem:[#allocation8 + $0x48] sm:$0xff]
    %v589 = vld [vmem:[#allocation8 + $0x50] sm:$0xff]
    %v590 = vld [vmem:[#allocation8 + $0x58] sm:$0xff]
    %v591 = vld [vmem:[#allocation8 + $0x60] sm:$0xff]
    %v592 = vld [vmem:[#allocation8 + $0x68] sm:$0xff]
    %v593 = vld [vmem:[#allocation8 + $0x70] sm:$0xff]
    %v594 = vld [vmem:[#allocation8 + $0x78] sm:$0xff]
    %v595 = vld [vmem:[#allocation8 + $0x80] sm:$0xff]
    %v596 = vld [vmem:[#allocation8 + $0x88] sm:$0xff]
    %v597 = vld [vmem:[#allocation8 + $0x90] sm:$0xff]
    %v598 = vld [vmem:[#allocation8 + $0x98] sm:$0xff]
    %v599 = vld [vmem:[#allocation8 + $0xa0] sm:$0xff]
    %v600 = vld [vmem:[#allocation8 + $0xa8] sm:$0xff]
    %v601 = vld [vmem:[#allocation8 + $0xb0] sm:$0xff]
    %v602 = vld [vmem:[#allocation8 + $0xb8] sm:$0xff]
    %v603 = vld [vmem:[#allocation8 + $0xc0] sm:$0xff]
    %v604 = vld [vmem:[#allocation8 + $0xc8] sm:$0xff]
    %v605 = vld [vmem:[#allocation8 + $0xd0] sm:$0xff]
    %v606 = vld [vmem:[#allocation8 + $0xd8] sm:$0xff]
    %v607 = vld [vmem:[#allocation8 + $0xe0] sm:$0xff]
    %v608 = vld [vmem:[#allocation8 + $0xe8] sm:$0xff]
    %v609 = vld [vmem:[#allocation8 + $0xf0] sm:$0xff]
    %v610 = vld [vmem:[#allocation8 + $0xf8] sm:$0xff]
    %v611 = vld [vmem:[%s4] sm:$0x1]
    %v613 = vlaneseq
    %v614 = vshrl.u32 %v613, 7
    %v615 = vsub.s32 0, %v614
    %v616 = vrot.slane %v611, %v615
    %618 = vmatprep.subr.mxu0 0.0
    %619 = vmatpush1.msra.mxu0 %v594
    %620 = vmatprep.subr.mxu0 0.0
    %621 = vmatpush1.msra.mxu0 %v593
    %622 = vmatprep.subr.mxu0 0.0
    %623 = vmatpush1.msra.mxu0 %v592
    %624 = vmatprep.subr.mxu0 0.0
    %625 = vmatpush1.msra.mxu0 %v591
    %626 = vmatprep.subr.mxu0 0.0
    %627 = vmatpush1.msra.mxu0 %v590
    %628 = vmatprep.subr.mxu0 0.0
    %629 = vmatpush1.msra.mxu0 %v589
    %630 = vmatprep.subr.mxu0 0.0
    %631 = vmatpush1.msra.mxu0 %v588
    %632 = vmatprep.subr.mxu0 0.0
    %633 = vmatpush1.msra.mxu0 %v587
    %634 = vmatprep.subr.mxu0 0.0
    %635 = vmatpush1.msra.mxu0 %v586
    %636 = vmatprep.subr.mxu0 0.0
    %637 = vmatpush1.msra.mxu0 %v585
    %638 = vmatprep.subr.mxu0 0.0
    %639 = vmatpush1.msra.mxu0 %v584
    %640 = vmatprep.subr.mxu0 0.0
    %641 = vmatpush1.msra.mxu0 %v583
    %642 = vmatprep.subr.mxu0 0.0
    %643 = vmatpush1.msra.mxu0 %v582
    %644 = vmatprep.subr.mxu0 0.0
    %645 = vmatpush1.msra.mxu0 %v581
    %646 = vmatprep.subr.mxu0 0.0
    %647 = vmatpush1.msra.mxu0 %v580
    %648 = vmatprep.subr.mxu0 0.0
    %649 = vmatpush1.msra.mxu0 %v579
    %650 = vmatprep.subr.mxu0 0.0
    %651 = vmatpush2.msra.mxu0 %v610
    %652 = vmatprep.subr.mxu0 0.0
    %653 = vmatpush2.msra.mxu0 %v609
    %654 = vmatprep.subr.mxu0 0.0
    %655 = vmatpush2.msra.mxu0 %v608
    %656 = vmatprep.subr.mxu0 0.0
    %657 = vmatpush2.msra.mxu0 %v607
    %658 = vmatprep.subr.mxu0 0.0
    %659 = vmatpush2.msra.mxu0 %v606
    %660 = vmatprep.subr.mxu0 0.0
    %661 = vmatpush2.msra.mxu0 %v605
    %662 = vmatprep.subr.mxu0 0.0
    %663 = vmatpush2.msra.mxu0 %v604
    %664 = vmatprep.subr.mxu0 0.0
    %665 = vmatpush2.msra.mxu0 %v603
    %666 = vmatprep.subr.mxu0 0.0
    %667 = vmatpush2.msra.mxu0 %v602
    %668 = vmatprep.subr.mxu0 0.0
    %669 = vmatpush2.msra.mxu0 %v601
    %670 = vmatprep.subr.mxu0 0.0
    %671 = vmatpush2.msra.mxu0 %v600
    %672 = vmatprep.subr.mxu0 0.0
    %673 = vmatpush2.msra.mxu0 %v599
    %674 = vmatprep.subr.mxu0 0.0
    %675 = vmatpush2.msra.mxu0 %v598
    %676 = vmatprep.subr.mxu0 0.0
    %677 = vmatpush2.msra.mxu0 %v597
    %678 = vmatprep.subr.mxu0 0.0
    %679 = vmatpush2.msra.mxu0 %v596
    %680 = vmatprep.subr.mxu0 0.0
    %681 = vmatpush2.msra.mxu0 %v595
    %682 = vmatprep.mubr.f32.mxu0 %v578
    %683 = vmatmul.mubr.f32.gmra.mxu0 %v577
    %v684 = vpop.f32.mrf.mxu0
    %v685 = vadd.f32 %v616, %v684
    %v686 = vpop.f32.mrf.mxu0
    %687 = vdwg.mxu0
    %v688 = vmax.f32 %v685, 0.0
    %v689 = vld [vmem:[%s5] sm:$0x1]
    %s690 = sld [smem:[#allocation2]]
    %v691 = vstv %s690
    %692 = vmatprep.subr.mxu0 0.0
    %693 = vmatpush1.xpose.msra.mxu0 0.0
    %694 = vmatprep.subr.mxu0 0.0
    %695 = vmatpush1.xpose.msra.mxu0 0.0
    %696 = vmatprep.subr.mxu0 0.0
    %697 = vmatpush1.xpose.msra.mxu0 0.0
    %698 = vmatprep.subr.mxu0 0.0
    %699 = vmatpush1.xpose.msra.mxu0 0.0
    %700 = vmatprep.subr.mxu0 0.0
    %701 = vmatpush1.xpose.msra.mxu0 0.0
    %702 = vmatprep.subr.mxu0 0.0
    %703 = vmatpush1.xpose.msra.mxu0 0.0
    %704 = vmatprep.subr.mxu0 0.0
    %705 = vmatpush1.xpose.msra.mxu0 0.0
    %706 = vmatprep.subr.mxu0 0.0
    %707 = vmatpush1.xpose.msra.mxu0 0.0
    %708 = vmatprep.subr.mxu0 0.0
    %709 = vmatpush1.xpose.msra.mxu0 0.0
    %710 = vmatprep.subr.mxu0 0.0
    %711 = vmatpush1.xpose.msra.mxu0 0.0
    %712 = vmatprep.subr.mxu0 0.0
    %713 = vmatpush1.xpose.msra.mxu0 0.0
    %714 = vmatprep.subr.mxu0 0.0
    %715 = vmatpush1.xpose.msra.mxu0 0.0
    %716 = vmatprep.subr.mxu0 0.0
    %717 = vmatpush1.xpose.msra.mxu0 0.0
    %718 = vmatprep.subr.mxu0 0.0
    %719 = vmatpush1.xpose.msra.mxu0 0.0
    %720 = vmatprep.subr.mxu0 0.0
    %721 = vmatpush1.xpose.msra.mxu0 0.0
    %722 = vmatprep.subr.mxu0 0.0
    %723 = vmatpush1.xpose.msra.mxu0 %v688
    %724 = vmatprep.subr.mxu0 0.0
    %725 = vmatpush2.xpose.msra.mxu0 0.0
    %726 = vmatprep.subr.mxu0 0.0
    %727 = vmatpush2.xpose.msra.mxu0 0.0
    %728 = vmatprep.subr.mxu0 0.0
    %729 = vmatpush2.xpose.msra.mxu0 0.0
    %730 = vmatprep.subr.mxu0 0.0
    %731 = vmatpush2.xpose.msra.mxu0 0.0
    %732 = vmatprep.subr.mxu0 0.0
    %733 = vmatpush2.xpose.msra.mxu0 0.0
    %734 = vmatprep.subr.mxu0 0.0
    %735 = vmatpush2.xpose.msra.mxu0 0.0
    %736 = vmatprep.subr.mxu0 0.0
    %737 = vmatpush2.xpose.msra.mxu0 0.0
    %738 = vmatprep.subr.mxu0 0.0
    %739 = vmatpush2.xpose.msra.mxu0 0.0
    %740 = vmatprep.subr.mxu0 0.0
    %741 = vmatpush2.xpose.msra.mxu0 0.0
    %742 = vmatprep.subr.mxu0 0.0
    %743 = vmatpush2.xpose.msra.mxu0 0.0
    %744 = vmatprep.subr.mxu0 0.0
    %745 = vmatpush2.xpose.msra.mxu0 0.0
    %746 = vmatprep.subr.mxu0 0.0
    %747 = vmatpush2.xpose.msra.mxu0 0.0
    %748 = vmatprep.subr.mxu0 0.0
    %749 = vmatpush2.xpose.msra.mxu0 0.0
    %750 = vmatprep.subr.mxu0 0.0
    %751 = vmatpush2.xpose.msra.mxu0 0.0
    %752 = vmatprep.subr.mxu0 0.0
    %753 = vmatpush2.xpose.msra.mxu0 0.0
    %754 = vmatprep.subr.mxu0 0.0
    %755 = vmatpush2.xpose.msra.mxu0 0.0
    %756 = vmatprep.mubr.f32.mxu0 0.0
    %757 = vmatmul.mubr.f32.gmra.mxu0 %v689
    %v758 = vpop.f32.mrf.mxu0
    %v759 = vadd.f32 %v691, %v758
    %v760 = vpop.f32.mrf.mxu0
    %761 = vdwg.mxu0
    %vm762 = vcmask 57344
    %763 = vst.msk [vmem:[#allocation9] sm:$0x1] %vm762, %v759
    // Predicated region
    $region42: #{tpu_custom_call.1} parent=1 // pred_check
      _
    $region43: #{tpu_custom_call.1} parent=1 // pred_check_branch
      %765 = sbr.rel (0) target = $region45
    $region44: #{tpu_custom_call.1} parent=1 // pred_region
      %s767 = ssub.s32 16, 16
      %768 = vsyncadd [#allocation5], %s767
      %s770 = sshll.u32 [#allocation9], 4
      %s771 = int_to_ptr.vmem [resolvable:$true] %s770
      %773 = dma.vmem_to_hbm [thread:$0]  %s771, 16, %s7, [#allocation5]
    $region45: #{tpu_custom_call.1} parent=1 // pred_fallthru
      _
    // Predicated region
    $region46: #{tpu_custom_call.1} parent=1 // pred_check
      _
    $region47: #{tpu_custom_call.1} parent=1 // pred_check_branch
      %775 = sbr.rel (0) target = $region49
    $region48: #{tpu_custom_call.1} parent=1 // pred_region
      %776 = dma.done [#allocation5], 16
    $region49: #{tpu_custom_call.1} parent=1 // pred_fallthru
      _
    %777 = vsyncpa [#allocation4], 1
    %778 = vsyncpa [#allocation7], 1
    %779 = vsyncpa [#allocation5], 1

</llo_original>
